<compile_context>
chip_gen: v7x
topology: tpu7x:2x2x1
jax: 0.10.0
libtpu: 0.0.40
codegen_flags: <defaults>
</compile_context>

<pallas_src>
import functools

import jax
import jax.numpy as jnp
from jax import lax
from jax.experimental import pallas as pl
from jax.experimental.pallas import tpu as pltpu

LANE = 128


def _ceil_to(n, m):
    return ((n + m - 1) // m) * m


def _pad_last(a, size):
    pad = size - a.shape[-1]
    if pad == 0:
        return a
    return jnp.pad(a, [(0, 0)] * (a.ndim - 1) + [(0, pad)])


# ----------------------------------------------------------------------------
# Pallas kernel: im2col conv + folded-BN (+ fused 1x1-proj shortcut / identity
# residual) (+ ReLU), one image per grid step.
# ----------------------------------------------------------------------------
def _fused_conv_bn_kernel(x_ref, w_ref, scale_ref, bias_ref, *rest,
                          ksize, padding, do_relu, res_mode):
    """Per grid step (one image, channels pre-padded to a multiple of 128):
         x_ref:     (H, W, Cin)        bf16 input tile (spatially unpadded)
         w_ref:     (K*K*Cin, Cout)    bf16 im2col weights
         scale_ref: (1, Cout)          f32  gamma / sqrt(var + eps)
         bias_ref:  (1, Cout)          f32  beta - mean * scale
         r_ref:     (M, Cr)            bf16 shortcut input (identity / proj), optional
         wd/sd/bd:  1x1 proj weights + folded BN, optional
         out_ref:   (M, Cout)          M = Ho*Wo (flattened spatial, lane-dense)
       scratch:
         xf_ref:    (Hp, Wp, Cin) f32  zero-padded upcast of x
         p_ref:     (M, K*K*Cin)  bf16 im2col patches
    """
    if res_mode == "proj":
        r_ref, wd_ref, sd_ref, bd_ref, out_ref, xf_ref, p_ref = rest
    elif res_mode == "identity":
        r_ref, out_ref, xf_ref, p_ref = rest
    else:
        out_ref, xf_ref, p_ref = rest

    H, W, Cin = x_ref.shape
    M, Cout = out_ref.shape
    K, pad = ksize, padding
    Ho = H + 2 * pad - K + 1
    Wo = W + 2 * pad - K + 1

    # --- upcast input tile into a zero-padded f32 VMEM scratch (in-kernel halo) ---
    if pad > 0:
        xf_ref[...] = jnp.zeros_like(xf_ref)
        xf_ref[pad:pad + H, pad:pad + W, :] = x_ref[...].astype(jnp.float32)
    else:
        xf_ref[...] = x_ref[...].astype(jnp.float32)

    # --- software im2col: K*K shifted windows -> one lane-dense bf16 patch tile ---
    for kh in range(K):
        for kw in range(K):
            t = kh * K + kw
            win = xf_ref[kh:kh + Ho, kw:kw + Wo, :]              # (Ho, Wo, Cin) f32
            p_ref[:, t * Cin:(t + 1) * Cin] = win.reshape(M, Cin).astype(jnp.bfloat16)

    # --- single MXU matmul over all taps, f32 accumulation ---
    acc = jnp.dot(p_ref[...], w_ref[...], preferred_element_type=jnp.float32)
    y = acc * scale_ref[...] + bias_ref[...]                     # folded BatchNorm (f32)

    # --- fused shortcut ---
    if res_mode == "identity":
        y = y + r_ref[...].astype(jnp.float32)
    elif res_mode == "proj":                                     # 1x1 conv + BN shortcut
        racc = jnp.dot(r_ref[...], wd_ref[...], preferred_element_type=jnp.float32)
        y = y + (racc * sd_ref[...] + bd_ref[...])

    if do_relu:
        y = jnp.maximum(y, 0.0)
    out_ref[...] = y.astype(out_ref.dtype)


def fused_conv_bn(x, w_flat, scale, bias, *, ksize, padding, do_relu, out_dtype,
                  residual=None, proj=None):
    """x: (N, H, W, Cin_p) bf16.  w_flat: (K*K*Cin_p, Cout_p) bf16.
       residual: (N, Ho*Wo, Cr) bf16 or None.  proj: (wd, sd, bd) or None.
       Returns (N, Ho, Wo, Cout_p) in `out_dtype` (stride-1 conv)."""
    N, H, W, Cin_p = x.shape
    Cout_p = w_flat.shape[-1]
    Hp, Wp = H + 2 * padding, W + 2 * padding
    Ho, Wo = Hp - ksize + 1, Wp - ksize + 1
    M = Ho * Wo

    inputs = [x, w_flat, scale, bias]
    in_specs = [
        pl.BlockSpec((None, H, W, Cin_p), lambda n: (n, 0, 0, 0)),
        pl.BlockSpec(w_flat.shape, lambda n: (0, 0)),
        pl.BlockSpec((1, Cout_p), lambda n: (0, 0)),
        pl.BlockSpec((1, Cout_p), lambda n: (0, 0)),
    ]
    res_mode = "none"
    if residual is not None:
        res_mode = "proj" if proj is not None else "identity"
        Cr = residual.shape[-1]
        inputs.append(residual)
        in_specs.append(pl.BlockSpec((None, M, Cr), lambda n: (n, 0, 0)))
        if proj is not None:
            wd, sd, bd = proj
            inputs += [wd, sd, bd]
            in_specs += [pl.BlockSpec(wd.shape, lambda n: (0, 0)),
                         pl.BlockSpec((1, Cout_p), lambda n: (0, 0)),
                         pl.BlockSpec((1, Cout_p), lambda n: (0, 0))]

    kernel = functools.partial(_fused_conv_bn_kernel, ksize=ksize, padding=padding,
                               do_relu=do_relu, res_mode=res_mode)
    out = pl.pallas_call(
        kernel,
        out_shape=jax.ShapeDtypeStruct((N, M, Cout_p), out_dtype),
        grid=(N,),
        in_specs=in_specs,
        out_specs=pl.BlockSpec((None, M, Cout_p), lambda n: (n, 0, 0)),
        scratch_shapes=[
            pltpu.VMEM((Hp, Wp, Cin_p), jnp.float32),
            pltpu.VMEM((M, ksize * ksize * Cin_p), jnp.bfloat16),
        ],
        compiler_params=pltpu.CompilerParams(
            dimension_semantics=("parallel",),
            vmem_limit_bytes=32 * 1024 * 1024,
        ),
    )(*inputs)
    return out.reshape(N, Ho, Wo, Cout_p)


# ----------------------------------------------------------------------------
# Weight repacking helpers
# ----------------------------------------------------------------------------
def _im2col_weight(w_oihw, cin_p, cout_p):
    """(Cout, Cin, K, K) -> (K*K*cin_p, cout_p) bf16, tap-major / channel-minor rows."""
    cout, cin, k, _ = w_oihw.shape
    w = jnp.transpose(w_oihw, (2, 3, 1, 0))                       # (K, K, Cin, Cout)
    w = jnp.pad(w, ((0, 0), (0, 0), (0, cin_p - cin), (0, cout_p - cout)))
    return w.reshape(k * k * cin_p, cout_p).astype(jnp.bfloat16)


def _s2d_weight(w_oihw, cin1_p, cout_p):
    """Regroup a 3x3 stride-2 kernel into an exact stride-1 2x2 kernel over the
       2x2 space-to-depth input (s2d channel order = (p*2+q)*Cin + c)."""
    cout, cin = w_oihw.shape[0], w_oihw.shape[1]
    w = jnp.transpose(w_oihw, (2, 3, 1, 0))                       # (3, 3, Cin, Cout)
    w = jnp.pad(w, ((0, 1), (0, 1), (0, 0), (0, 0)))              # taps kh==3 / kw==3 are zero
    w = w.reshape(2, 2, 2, 2, cin, cout)                          # (a, p, b, q, c, o); kh=2a+p, kw=2b+q
    w = jnp.transpose(w, (0, 2, 1, 3, 4, 5))                      # (a, b, p, q, c, o)
    w = w.reshape(2, 2, 4 * cin, cout)
    w = jnp.pad(w, ((0, 0), (0, 0), (0, cin1_p - 4 * cin), (0, cout_p - cout)))
    return w.reshape(4 * cin1_p, cout_p).astype(jnp.bfloat16)


# ----------------------------------------------------------------------------
# BasicBlock forward (Pallas)
# ----------------------------------------------------------------------------
def basic_block(x_nchw, params, c_in, c_out, is_downsample=False):
    """Mirrors BasicBlock.forward.  x_nchw: (N, c_in, H, W) -> (N, c_out, Ho, Wo)."""
    stride = 2 if is_downsample else 1
    use_proj = is_downsample or (c_in != c_out)
    N, _, H, W = x_nchw.shape
    cin_p = _ceil_to(c_in, LANE)
    cout_p = _ceil_to(c_out, LANE)

    x = jnp.transpose(x_nchw, (0, 2, 3, 1)).astype(jnp.float32)   # NHWC

    # ---- conv1 + bn1 + ReLU ----
    if stride == 2:
        # Exact rewrite: stride-2 3x3/pad-1 conv == stride-1 2x2 conv over the
        # 4-phase space-to-depth input (computes only the needed outputs).
        assert H % 2 == 0 and W % 2 == 0
        xp = jnp.pad(x, ((0, 0), (1, 1), (1, 1), (0, 0)))
        s2d = jnp.concatenate([xp[:, p::2, q::2, :] for p in (0, 1) for q in (0, 1)],
                              axis=-1)                            # (N, H//2+1, W//2+1, 4*c_in)
        cin1_p = _ceil_to(4 * c_in, LANE)
        x1 = _pad_last(s2d, cin1_p).astype(jnp.bfloat16)
        w1 = _s2d_weight(params["w1"], cin1_p, cout_p)
        k1, p1 = 2, 0
    else:
        x1 = _pad_last(x, cin_p).astype(jnp.bfloat16)
        w1 = _im2col_weight(params["w1"], cin_p, cout_p)
        k1, p1 = 3, 1
    s1 = _pad_last(params["s1"][None, :], cout_p).astype(jnp.float32)
    b1 = _pad_last(params["b1"][None, :], cout_p).astype(jnp.float32)
    y = fused_conv_bn(x1, w1, s1, b1, ksize=k1, padding=p1, do_relu=True,
                      out_dtype=jnp.bfloat16)                     # bf16 intermediate

    Ho, Wo = y.shape[1], y.shape[2]

    # ---- shortcut inputs (projection is fused into the conv2 kernel) ----
    if use_proj:
        xr = x[:, ::2, ::2, :] if stride == 2 else x              # 1x1 stride-2 == subsample + 1x1
        res = _pad_last(xr, cin_p).astype(jnp.bfloat16).reshape(N, Ho * Wo, cin_p)
        wd = _im2col_weight(params["wd"], cin_p, cout_p)
        sd = _pad_last(params["sd"][None, :], cout_p).astype(jnp.float32)
        bd = _pad_last(params["bd"][None, :], cout_p).astype(jnp.float32)
        proj = (wd, sd, bd)
    else:
        res = _pad_last(x, cout_p).astype(jnp.bfloat16).reshape(N, Ho * Wo, cout_p)
        proj = None

    # ---- conv2 + bn2 + shortcut add + ReLU, one fused kernel ----
    w2 = _im2col_weight(params["w2"], cout_p, cout_p)
    s2 = _pad_last(params["s2"][None, :], cout_p).astype(jnp.float32)
    b2 = _pad_last(params["b2"][None, :], cout_p).astype(jnp.float32)
    out = fused_conv_bn(y, w2, s2, b2, ksize=3, padding=1, do_relu=True,
                        out_dtype=jnp.float32, residual=res, proj=proj)

    return jnp.transpose(out[..., :c_out], (0, 3, 1, 2))


# ----------------------------------------------------------------------------
# Parameters (deterministic synthetic init) + pure-JAX reference
# ----------------------------------------------------------------------------
def _fold_bn(gamma, beta, mean, var, eps=1e-5):
    scale = gamma / jnp.sqrt(var + eps)
    return scale, beta - mean * scale


def _bn_params(key, c):
    k1, k2, k3, k4 = jax.random.split(key, 4)
    gamma = jax.random.uniform(k1, (c,), jnp.float32, 0.5, 1.5)
    beta = jax.random.uniform(k2, (c,), jnp.float32, -0.2, 0.2)
    mean = jax.random.uniform(k3, (c,), jnp.float32, -0.2, 0.2)
    var = jax.random.uniform(k4, (c,), jnp.float32, 0.5, 1.5)
    return _fold_bn(gamma, beta, mean, var)


def make_params(key, c_in, c_out, is_downsample):
    k1, k2, k3, k4, k5, k6 = jax.random.split(key, 6)
    p = {}
    p["w1"] = 0.1 * jax.random.normal(k1, (c_out, c_in, 3, 3), jnp.float32)
    p["s1"], p["b1"] = _bn_params(k2, c_out)
    p["w2"] = 0.1 * jax.random.normal(k3, (c_out, c_out, 3, 3), jnp.float32)
    p["s2"], p["b2"] = _bn_params(k4, c_out)
    if is_downsample or (c_in != c_out):
        p["wd"] = 0.1 * jax.random.normal(k5, (c_out, c_in, 1, 1), jnp.float32)
        p["sd"], p["bd"] = _bn_params(k6, c_out)
    return p


def ref_basic_block(x_nchw, params, c_in, c_out, is_downsample=False):
    """Pure-JAX f32 reference (NCHW, lax.conv) for numerical validation."""
    dn = ("NCHW", "OIHW", "NCHW")

    def conv(x, w, stride, pad):
        return lax.conv_general_dilated(
            x, w, (stride, stride), [(pad, pad), (pad, pad)],
            dimension_numbers=dn, precision=lax.Precision.HIGHEST)

    def bn(x, s, b):
        return x * s[None, :, None, None] + b[None, :, None, None]

    stride = 2 if is_downsample else 1
    use_proj = is_downsample or (c_in != c_out)
    y = jax.nn.relu(bn(conv(x_nchw, params["w1"], stride, 1), params["s1"], params["b1"]))
    y = bn(conv(y, params["w2"], 1, 1), params["s2"], params["b2"])
    if use_proj:
        r = bn(conv(x_nchw, params["wd"], stride, 0), params["sd"], params["bd"])
    else:
        r = x_nchw
    return jax.nn.relu(r + y)


# ----------------------------------------------------------------------------
if __name__ == "__main__":
    key = jax.random.PRNGKey(0)
    kp1, kp2, kx1, kx2 = jax.random.split(key, 4)

    # bf16 operands with f32 accumulation -> compare against the f32 reference
    # with a bf16-appropriate tolerance.
    TOL = 2e-2

    # Case 1: is_downsample=True (3x3 stride-2 conv + fused 1x1 stride-2 projection)
    c_in, c_out = 4, 8
    params1 = make_params(kp1, c_in, c_out, True)
    x1 = jax.random.normal(kx1, (2, c_in, 16, 16), jnp.float32)
    out1 = basic_block(x1, params1, c_in, c_out, is_downsample=True)
    jax.block_until_ready(out1)
    assert out1.shape == (2, c_out, 8, 8)
    ref1 = ref_basic_block(x1, params1, c_in, c_out, True)
    assert jnp.allclose(out1, ref1, atol=TOL, rtol=TOL)

    # Case 2: identity residual (c_in == c_out, stride 1)
    params2 = make_params(kp2, 8, 8, False)
    x2 = jax.random.normal(kx2, (2, 8, 16, 16), jnp.float32)
    out2 = basic_block(x2, params2, 8, 8, is_downsample=False)
    jax.block_until_ready(out2)
    assert out2.shape == (2, 8, 16, 16)
    ref2 = ref_basic_block(x2, params2, 8, 8, False)
    assert jnp.allclose(out2, ref2, atol=TOL, rtol=TOL)

    print("KERNEL_OK")
</pallas_src>

<mosaic_0001>
module attributes {stable_mosaic.version = 11 : i64} {
  func.func @_fused_conv_bn_kernel(%arg0: i32, %arg1: memref<1x9x9x128xbf16, #tpu.memory_space<vmem>>, %arg2: memref<512x128xbf16, #tpu.memory_space<vmem>>, %arg3: memref<1x128xf32, #tpu.memory_space<vmem>>, %arg4: memref<1x128xf32, #tpu.memory_space<vmem>>, %arg5: memref<1x64x128xbf16, #tpu.memory_space<vmem>>, %arg6: memref<9x9x128xf32, #tpu.memory_space<vmem>>, %arg7: memref<64x512xbf16, #tpu.memory_space<vmem>>) attributes {dimension_semantics = [#tpu.dimension_semantics<parallel>], iteration_bounds = array<i64: 2>, scalar_prefetch = 0 : i64, scratch_operands = 2 : i64, tpu.core_type = #tpu.core_type<tc>, window_params = [{transform_indices = @transform_0, window_bounds = array<i64: 1, 9, 9, 128>}, {pipeline_mode = #tpu.pipeline_mode<synchronous>, transform_indices = @transform_1, window_bounds = array<i64: 512, 128>}, {pipeline_mode = #tpu.pipeline_mode<synchronous>, transform_indices = @transform_2, window_bounds = array<i64: 1, 128>}, {pipeline_mode = #tpu.pipeline_mode<synchronous>, transform_indices = @transform_3, window_bounds = array<i64: 1, 128>}, {transform_indices = @transform_4, window_bounds = array<i64: 1, 64, 128>}]} {
    %c0 = arith.constant 0 : index
    %c0_0 = arith.constant 0 : index
    %c0_1 = arith.constant 0 : index
    %c0_2 = arith.constant 0 : index
    %0 = vector.load %arg1[%c0, %c0_0, %c0_1, %c0_2] : memref<1x9x9x128xbf16, #tpu.memory_space<vmem>>, vector<1x9x9x128xbf16>
    %1 = vector.shape_cast %0 : vector<1x9x9x128xbf16> to vector<9x9x128xbf16>
    %2 = arith.extf %1 : vector<9x9x128xbf16> to vector<9x9x128xf32>
    %c0_3 = arith.constant 0 : index
    %c0_4 = arith.constant 0 : index
    %c0_5 = arith.constant 0 : index
    %3 = vector.load %arg6[%c0_3, %c0_4, %c0_5] : memref<9x9x128xf32, #tpu.memory_space<vmem>>, vector<9x9x128xf32>
    tpu.vector_store %arg6[%c0_3, %c0_4, %c0_5], %2 {strides = array<i32>} : memref<9x9x128xf32, #tpu.memory_space<vmem>>, vector<9x9x128xf32>,
    %c0_6 = arith.constant 0 : index
    %c0_7 = arith.constant 0 : index
    %c0_8 = arith.constant 0 : index
    %4 = vector.load %arg6[%c0_6, %c0_7, %c0_8] : memref<9x9x128xf32, #tpu.memory_space<vmem>>, vector<8x8x128xf32>
    %5 = vector.shape_cast %4 : vector<8x8x128xf32> to vector<64x128xf32>
    %6 = arith.truncf %5 : vector<64x128xf32> to vector<64x128xbf16>
    %c0_9 = arith.constant 0 : index
    %c0_10 = arith.constant 0 : index
    %7 = vector.load %arg7[%c0_9, %c0_10] : memref<64x512xbf16, #tpu.memory_space<vmem>>, vector<64x128xbf16>
    tpu.vector_store %arg7[%c0_9, %c0_10], %6 {strides = array<i32>} : memref<64x512xbf16, #tpu.memory_space<vmem>>, vector<64x128xbf16>,
    %c0_11 = arith.constant 0 : index
    %c1 = arith.constant 1 : index
    %c0_12 = arith.constant 0 : index
    %8 = vector.load %arg6[%c0_11, %c1, %c0_12] : memref<9x9x128xf32, #tpu.memory_space<vmem>>, vector<8x8x128xf32>
    %9 = vector.shape_cast %8 : vector<8x8x128xf32> to vector<64x128xf32>
    %10 = arith.truncf %9 : vector<64x128xf32> to vector<64x128xbf16>
    %c0_13 = arith.constant 0 : index
    %c128 = arith.constant 128 : index
    %11 = vector.load %arg7[%c0_13, %c128] : memref<64x512xbf16, #tpu.memory_space<vmem>>, vector<64x128xbf16>
    tpu.vector_store %arg7[%c0_13, %c128], %10 {strides = array<i32>} : memref<64x512xbf16, #tpu.memory_space<vmem>>, vector<64x128xbf16>,
    %c1_14 = arith.constant 1 : index
    %c0_15 = arith.constant 0 : index
    %c0_16 = arith.constant 0 : index
    %12 = vector.load %arg6[%c1_14, %c0_15, %c0_16] : memref<9x9x128xf32, #tpu.memory_space<vmem>>, vector<8x8x128xf32>
    %13 = vector.shape_cast %12 : vector<8x8x128xf32> to vector<64x128xf32>
    %14 = arith.truncf %13 : vector<64x128xf32> to vector<64x128xbf16>
    %c0_17 = arith.constant 0 : index
    %c256 = arith.constant 256 : index
    %15 = vector.load %arg7[%c0_17, %c256] : memref<64x512xbf16, #tpu.memory_space<vmem>>, vector<64x128xbf16>
    tpu.vector_store %arg7[%c0_17, %c256], %14 {strides = array<i32>} : memref<64x512xbf16, #tpu.memory_space<vmem>>, vector<64x128xbf16>,
    %c1_18 = arith.constant 1 : index
    %c1_19 = arith.constant 1 : index
    %c0_20 = arith.constant 0 : index
    %16 = vector.load %arg6[%c1_18, %c1_19, %c0_20] : memref<9x9x128xf32, #tpu.memory_space<vmem>>, vector<8x8x128xf32>
    %17 = vector.shape_cast %16 : vector<8x8x128xf32> to vector<64x128xf32>
    %18 = arith.truncf %17 : vector<64x128xf32> to vector<64x128xbf16>
    %c0_21 = arith.constant 0 : index
    %c384 = arith.constant 384 : index
    %19 = vector.load %arg7[%c0_21, %c384] : memref<64x512xbf16, #tpu.memory_space<vmem>>, vector<64x128xbf16>
    tpu.vector_store %arg7[%c0_21, %c384], %18 {strides = array<i32>} : memref<64x512xbf16, #tpu.memory_space<vmem>>, vector<64x128xbf16>,
    %c0_22 = arith.constant 0 : index
    %c0_23 = arith.constant 0 : index
    %20 = vector.load %arg7[%c0_22, %c0_23] : memref<64x512xbf16, #tpu.memory_space<vmem>>, vector<64x512xbf16>
    %c0_24 = arith.constant 0 : index
    %c0_25 = arith.constant 0 : index
    %21 = vector.load %arg2[%c0_24, %c0_25] : memref<512x128xbf16, #tpu.memory_space<vmem>>, vector<512x128xbf16>
    %cst = arith.constant dense<0.000000e+00> : vector<64x128xf32>
    %22 = tpu.matmul %20, %21, %cst {dimension_numbers = #tpu.dot_dimension_numbers<[1], [0], [0], [1], [0, 0, 1, 1], [], []>} : vector<64x512xbf16>, vector<512x128xbf16>, vector<64x128xf32> -> vector<64x128xf32>
    %c0_26 = arith.constant 0 : index
    %c0_27 = arith.constant 0 : index
    %23 = vector.load %arg3[%c0_26, %c0_27] : memref<1x128xf32, #tpu.memory_space<vmem>>, vector<1x128xf32>
    %24 = vector.broadcast %23 : vector<1x128xf32> to vector<64x128xf32>
    %25 = arith.mulf %22, %24 : vector<64x128xf32>
    %c0_28 = arith.constant 0 : index
    %c0_29 = arith.constant 0 : index
    %26 = vector.load %arg4[%c0_28, %c0_29] : memref<1x128xf32, #tpu.memory_space<vmem>>, vector<1x128xf32>
    %27 = vector.broadcast %26 : vector<1x128xf32> to vector<64x128xf32>
    %28 = arith.addf %25, %27 : vector<64x128xf32>
    %cst_30 = arith.constant 0.000000e+00 : f32
    %29 = vector.broadcast %cst_30 : f32 to vector<64x128xf32>
    %30 = arith.maximumf %28, %29 : vector<64x128xf32>
    %31 = arith.truncf %30 : vector<64x128xf32> to vector<64x128xbf16>
    %c0_31 = arith.constant 0 : index
    %c0_32 = arith.constant 0 : index
    %c0_33 = arith.constant 0 : index
    %32 = vector.load %arg5[%c0_31, %c0_32, %c0_33] : memref<1x64x128xbf16, #tpu.memory_space<vmem>>, vector<1x64x128xbf16>
    %33 = vector.shape_cast %32 : vector<1x64x128xbf16> to vector<64x128xbf16>
    %34 = vector.shape_cast %31 : vector<64x128xbf16> to vector<1x64x128xbf16>
    tpu.vector_store %arg5[%c0_31, %c0_32, %c0_33], %34 {strides = array<i32>} : memref<1x64x128xbf16, #tpu.memory_space<vmem>>, vector<1x64x128xbf16>,
    return
  }
  func.func @transform_0(%arg0: i32) -> (i32, i32, i32, i32) {
    %c0_i32 = arith.constant 0 : i32
    %c0_i32_0 = arith.constant 0 : i32
    %c0_i32_1 = arith.constant 0 : i32
    %c0_i32_2 = arith.constant 0 : i32
    return %arg0, %c0_i32, %c0_i32_0, %c0_i32_1 : i32, i32, i32, i32
  }
  func.func @transform_1(%arg0: i32) -> (i32, i32) {
    %c0_i32 = arith.constant 0 : i32
    %c0_i32_0 = arith.constant 0 : i32
    %c0_i32_1 = arith.constant 0 : i32
    return %c0_i32, %c0_i32_0 : i32, i32
  }
  func.func @transform_2(%arg0: i32) -> (i32, i32) {
    %c0_i32 = arith.constant 0 : i32
    %c0_i32_0 = arith.constant 0 : i32
    %c0_i32_1 = arith.constant 0 : i32
    return %c0_i32, %c0_i32_0 : i32, i32
  }
  func.func @transform_3(%arg0: i32) -> (i32, i32) {
    %c0_i32 = arith.constant 0 : i32
    %c0_i32_0 = arith.constant 0 : i32
    %c0_i32_1 = arith.constant 0 : i32
    return %c0_i32, %c0_i32_0 : i32, i32
  }
  func.func @transform_4(%arg0: i32) -> (i32, i32, i32) {
    %c0_i32 = arith.constant 0 : i32
    %c0_i32_0 = arith.constant 0 : i32
    %c0_i32_1 = arith.constant 0 : i32
    return %arg0, %c0_i32, %c0_i32_0 : i32, i32, i32
  }
}

</mosaic_0001>

<llo_original>
// kernel: tpu_custom_call.1
$region0: #{tpu_custom_call.1}
  #allocation0 [shape = 'u32[]', space=smem, size = 0x4, offset = 0x4, fixed_abs, tag = 'smem constant byte address 0x4 - core index']
  #allocation1 [shape = 'u32[144,128]{1,0:T(1,128)}', space=vmem, size = 0x12000, scoped, tag = 'internal scratch']
  #allocation2 [shape = 'f32[9,9,128]{2,1,0:T(8,128)}', space=vmem, size = 0x12000, scoped, tag = 'scratch operand']
  #allocation3 [shape = 'bf16[64,512]{1,0:T(16,128)(2,1)}', space=vmem, size = 0x10000, scoped, tag = 'scratch operand']
  %s0 = inlined_call_operand.vmem [shape: bf16[2,9,9,128], index: 0, kind: input, shape index: {}]
  %s1 = inlined_call_operand.hbm [shape: bf16[512,128], index: 1, kind: input, shape index: {}]
  %s2 = inlined_call_operand.vmem [shape: f32[1,128], index: 2, kind: input, shape index: {}]
  %s3 = inlined_call_operand.vmem [shape: f32[1,128], index: 3, kind: input, shape index: {}]
  %s4 = inlined_call_operand.hbm [shape: bf16[2,64,128], index: 4, kind: output, shape index: {}]
  %s5 = sld [smem:[#allocation0]]
  $region53: #{tpu_custom_call.1} parent=0
    _
  %s7 = ssub.s32 1, %s5
  %s8 = scalar_select 0, %s7, %s5
  $region1: #{tpu_custom_call.1} parent=0
    #allocation4 [shape = 'u8[131072]{0}', space=vmem, size = 0x20000, scoped, tag = 'input window, operand 1, single buffered']
    #allocation5 [shape = 's32[2]{0}', space=sflag, size = 0x8, scoped, tag = 'scoped memory for tpu_custom_call.1']
    #allocation6 [shape = 's32[2]{0}', space=sflag, size = 0x8, scoped, tag = 'scoped memory for tpu_custom_call.1']
    #allocation7 [shape = 'u8[32768]{0}', space=vmem, size = 0x8000, scoped, tag = 'output window, operand 0']
    %9 = vsyncpa [#allocation5], 0
    %10 = vsyncpa [#allocation6], 0
    %s11 = scalar_lea.sflag [#allocation6], 1
    %12 = vsyncpa %s11, 0
    loop: start=0, step=1, limit=4
    $region2: #{tpu_custom_call.1} parent=1 // loop_pre_header
      _
    $region3: #{tpu_custom_call.1} parent=1 // loop_header
      %s14 = sphi 0, %s18
      %p15 = scmp.ge.s32.totalorder %s14, 4
      %s24 = sphi 0, %s26
      %s27 = sphi 0, %s24
      %s28 = sphi 0, %s27
      %s44 = sphi 0, %s28
      %s48 = sphi 0, %s48
      %s50 = sphi 0, %s48
      %s51 = sphi 0, %s50
      %s65 = sphi 0, %s51
      %s69 = sphi 0, %s69
      %s71 = sphi 0, %s69
      %s72 = sphi 0, %s71
      %s86 = sphi 0, %s72
      %s90 = sphi 0, %s90
      %s92 = sphi 0, %s90
      %s93 = sphi 0, %s92
      %s107 = sphi 0, %s93
      %s113 = sphi 0, %s115
      %s116 = sphi 0, %s113
      %s117 = sphi 0, %s116
      %s133 = sphi 0, %s117
    $region4: #{tpu_custom_call.1} parent=1 // loop_header_branch
      %17 = sbr.rel (%p15) target = $region8
    $region5: #{tpu_custom_call.1} parent=1 // loop_body
      %s19 = ssub.s32 %s14, 1
      %s20 = ssub.s32 %s14, 2
      %s21 = sadd.s32 %s14, 1
      %s22 = ssub.s32 %s14, %s21
      %p23 = scmp.eq.s32.totalorder %s22, 0
      %s25 = sadd.s32 %s24, 1
      %s26 = scalar_select %p23, %s24, %s25
      %p29 = pneg %p23
      %p30 = scmp.eq.s32.totalorder %s14, 1
      %p31 = por %p29, %p30
      %p32 = scmp.ne.s32.totalorder %s24, %s27
      %p33 = scmp.eq.s32.totalorder %s14, 0
      %p34 = por %p32, %p33
      %p35 = scmp.ne.s32.totalorder %s24, %s27
      %p36 = scmp.eq.s32.totalorder %s19, 1
      %p37 = por %p35, %p36
      %p38 = scmp.ne.s32.totalorder %s27, %s28
      %p39 = scmp.eq.s32.totalorder %s19, 0
      %p40 = por %p38, %p39
      %p41 = scmp.ne.s32.totalorder %s27, %s28
      %p42 = scmp.eq.s32.totalorder %s20, 1
      %p43 = por %p41, %p42
      %p45 = scmp.ne.s32.totalorder %s28, %s44
      %p46 = scmp.eq.s32.totalorder %s20, 0
      %p47 = por %p45, %p46
      %s49 = sadd.s32 %s48, 1
      %p52 = scmp.eq.s32.totalorder %s14, 1
      %p53 = scmp.ne.s32.totalorder %s48, %s50
      %p54 = scmp.eq.s32.totalorder %s14, 0
      %p55 = por %p53, %p54
      %p56 = scmp.ne.s32.totalorder %s48, %s50
      %p57 = scmp.eq.s32.totalorder %s19, 1
      %p58 = por %p56, %p57
      %p59 = scmp.ne.s32.totalorder %s50, %s51
      %p60 = scmp.eq.s32.totalorder %s19, 0
      %p61 = por %p59, %p60
      %p62 = scmp.ne.s32.totalorder %s50, %s51
      %p63 = scmp.eq.s32.totalorder %s20, 1
      %p64 = por %p62, %p63
      %p66 = scmp.ne.s32.totalorder %s51, %s65
      %p67 = scmp.eq.s32.totalorder %s20, 0
      %p68 = por %p66, %p67
      %s70 = sadd.s32 %s69, 1
      %p73 = scmp.eq.s32.totalorder %s14, 1
      %p74 = scmp.ne.s32.totalorder %s69, %s71
      %p75 = scmp.eq.s32.totalorder %s14, 0
      %p76 = por %p74, %p75
      %p77 = scmp.ne.s32.totalorder %s69, %s71
      %p78 = scmp.eq.s32.totalorder %s19, 1
      %p79 = por %p77, %p78
      %p80 = scmp.ne.s32.totalorder %s71, %s72
      %p81 = scmp.eq.s32.totalorder %s19, 0
      %p82 = por %p80, %p81
      %p83 = scmp.ne.s32.totalorder %s71, %s72
      %p84 = scmp.eq.s32.totalorder %s20, 1
      %p85 = por %p83, %p84
      %p87 = scmp.ne.s32.totalorder %s72, %s86
      %p88 = scmp.eq.s32.totalorder %s20, 0
      %p89 = por %p87, %p88
      %s91 = sadd.s32 %s90, 1
      %p94 = scmp.eq.s32.totalorder %s14, 1
      %p95 = scmp.ne.s32.totalorder %s90, %s92
      %p96 = scmp.eq.s32.totalorder %s14, 0
      %p97 = por %p95, %p96
      %p98 = scmp.ne.s32.totalorder %s90, %s92
      %p99 = scmp.eq.s32.totalorder %s19, 1
      %p100 = por %p98, %p99
      %p101 = scmp.ne.s32.totalorder %s92, %s93
      %p102 = scmp.eq.s32.totalorder %s19, 0
      %p103 = por %p101, %p102
      %p104 = scmp.ne.s32.totalorder %s92, %s93
      %p105 = scmp.eq.s32.totalorder %s20, 1
      %p106 = por %p104, %p105
      %p108 = scmp.ne.s32.totalorder %s93, %s107
      %p109 = scmp.eq.s32.totalorder %s20, 0
      %p110 = por %p108, %p109
      %s111 = ssub.s32 %s14, %s21
      %p112 = scmp.eq.s32.totalorder %s111, 0
      %s114 = sadd.s32 %s113, 1
      %s115 = scalar_select %p112, %s113, %s114
      %p118 = pneg %p112
      %p119 = scmp.eq.s32.totalorder %s14, 1
      %p120 = por %p118, %p119
      %p121 = scmp.ne.s32.totalorder %s113, %s116
      %p122 = scmp.eq.s32.totalorder %s14, 0
      %p123 = por %p121, %p122
      %p124 = scmp.ne.s32.totalorder %s113, %s116
      %p125 = scmp.eq.s32.totalorder %s19, 1
      %p126 = por %p124, %p125
      %p127 = scmp.ne.s32.totalorder %s116, %s117
      %p128 = scmp.eq.s32.totalorder %s19, 0
      %p129 = por %p127, %p128
      %p130 = scmp.ne.s32.totalorder %s116, %s117
      %p131 = scmp.eq.s32.totalorder %s20, 1
      %p132 = por %p130, %p131
      %p134 = scmp.ne.s32.totalorder %s117, %s133
      %p135 = scmp.eq.s32.totalorder %s20, 0
      %p136 = por %p134, %p135
      %p137 = scmp.le.s32.totalorder 1, %s14
      %p138 = scmp.lt.s32.totalorder %s14, 3
      %p139 = pnand %p137, %p138
      %p140 = pneg %p139
      // Predicated region
      $region9: #{tpu_custom_call.1} parent=5 // pred_check
        _
      $region10: #{tpu_custom_call.1} parent=5 // pred_check_branch
        %142 = sbr.rel (%p139) target = $region12
      $region11: #{tpu_custom_call.1} parent=5 // pred_region
        %s143 = ssub.s32 %s14, 1
        // Predicated region
        $region13: #{tpu_custom_call.1} parent=11 // pred_check
          %p144 = pneg %p61
        $region14: #{tpu_custom_call.1} parent=11 // pred_check_branch
          %146 = sbr.rel (%p144) target = $region16
        $region15: #{tpu_custom_call.1} parent=11 // pred_region
          %s148 = ssub.s32 4096, 4096
          %149 = vsyncadd [#allocation5], %s148
          %s150 = sshll.u32 [#allocation4], 4
          %s151 = int_to_ptr.vmem [resolvable:$true] %s150
          %156 = dma.hbm_to_vmem [thread:$0]  %s1, 4096, %s151, [#allocation5], 64, 64, 4
        $region16: #{tpu_custom_call.1} parent=11 // pred_fallthru
          _
        // Predicated region
        $region17: #{tpu_custom_call.1} parent=11 // pred_check
          %p157 = pneg %p82
        $region18: #{tpu_custom_call.1} parent=11 // pred_check_branch
          %159 = sbr.rel (%p157) target = $region20
        $region19: #{tpu_custom_call.1} parent=11 // pred_region
          _
        $region20: #{tpu_custom_call.1} parent=11 // pred_fallthru
          _
        // Predicated region
        $region21: #{tpu_custom_call.1} parent=11 // pred_check
          %p160 = pneg %p103
        $region22: #{tpu_custom_call.1} parent=11 // pred_check_branch
          %162 = sbr.rel (%p160) target = $region24
        $region23: #{tpu_custom_call.1} parent=11 // pred_region
          _
        $region24: #{tpu_custom_call.1} parent=11 // pred_fallthru
          _
      $region12: #{tpu_custom_call.1} parent=5 // pred_fallthru
        _
      %p163 = scmp.lt.s32.totalorder %s14, 2
      // Predicated region
      $region25: #{tpu_custom_call.1} parent=5 // pred_check
        %p164 = pneg %p163
      $region26: #{tpu_custom_call.1} parent=5 // pred_check_branch
        %166 = sbr.rel (%p164) target = $region28
      $region27: #{tpu_custom_call.1} parent=5 // pred_region
        // Predicated region
        $region29: #{tpu_custom_call.1} parent=27 // pred_check
          %p167 = pneg %p34
        $region30: #{tpu_custom_call.1} parent=27 // pred_check_branch
          %169 = sbr.rel (%p167) target = $region32
        $region31: #{tpu_custom_call.1} parent=27 // pred_region
          %p170 = scmp.lt.s32.totalorder %s14, 1
          %s171 = scalar_select %p170, %s14, 1
          %s172 = smul.addr %s171, 18
          %s173 = smul.addr %s172, 4
          %s174 = scalar_lea.vmem %s0, %s173
        $region32: #{tpu_custom_call.1} parent=27 // pred_fallthru
          _
      $region28: #{tpu_custom_call.1} parent=5 // pred_fallthru
        _
      %p175 = scmp.le.s32.totalorder 1, %s14
      %p176 = scmp.lt.s32.totalorder %s14, 3
      %p177 = pnand %p175, %p176
      %p178 = pneg %p177
      // Predicated region
      $region33: #{tpu_custom_call.1} parent=5 // pred_check
        _
      $region34: #{tpu_custom_call.1} parent=5 // pred_check_branch
        %180 = sbr.rel (%p177) target = $region36
      $region35: #{tpu_custom_call.1} parent=5 // pred_region
        %s181 = ssub.s32 %s14, 1
        // Predicated region
        $region37: #{tpu_custom_call.1} parent=35 // pred_check
          %p182 = pneg %p61
        $region38: #{tpu_custom_call.1} parent=35 // pred_check_branch
          %184 = sbr.rel (%p182) target = $region40
        $region39: #{tpu_custom_call.1} parent=35 // pred_region
          %185 = dma.done [#allocation5], 4096
        $region40: #{tpu_custom_call.1} parent=35 // pred_fallthru
          _
        %p186 = scmp.lt.s32.totalorder %s19, 1
        %s187 = scalar_select %p186, %s19, 1
        %s188 = smul.addr %s187, 18
        %s189 = smul.addr %s188, 4
        %s190 = scalar_lea.vmem %s0, %s189
        %p191 = pneg %p40
        %p192 = pneg %p37
        %p193 = pneg %p61
        %p194 = pneg %p58
        %p195 = pneg %p82
        %p196 = pneg %p79
        %p197 = pneg %p103
        %p198 = pneg %p100
        %p199 = pneg %p129
        %p200 = pneg %p126
        %s201 = sand.u32 %s116, 1
        %s202 = scalar_lea.sflag [#allocation6], %s201
        %s203 = sand.u32 %s116, 1
        %s204 = smul.addr %s203, 32
        %s205 = scalar_lea.vmem [#allocation7], %s204
        %p206 = scmp.lt.s32.totalorder %s19, 1
        %s207 = scalar_select %p206, %s19, 1
        %s208 = smul.addr %s207, 18
        %s209 = smul.addr %s208, 4
        %s210 = scalar_lea.vmem %s0, %s209
        %v212 = vld [vmem:[%s210] sm:$0xf]
        %v213 = vld [vmem:[%s210 + $0x4] sm:$0x1]
        %v214 = vld [vmem:[%s210 + $0x8] sm:$0xf]
        %v215 = vld [vmem:[%s210 + $0xc] sm:$0x1]
        %v216 = vld [vmem:[%s210 + $0x10] sm:$0xf]
        %v217 = vld [vmem:[%s210 + $0x14] sm:$0x1]
        %v218 = vld [vmem:[%s210 + $0x18] sm:$0xf]
        %v219 = vld [vmem:[%s210 + $0x1c] sm:$0x1]
        %v220 = vld [vmem:[%s210 + $0x20] sm:$0xf]
        %v221 = vld [vmem:[%s210 + $0x24] sm:$0x1]
        %v222 = vld [vmem:[%s210 + $0x28] sm:$0xf]
        %v223 = vld [vmem:[%s210 + $0x2c] sm:$0x1]
        %v224 = vld [vmem:[%s210 + $0x30] sm:$0xf]
        %v225 = vld [vmem:[%s210 + $0x34] sm:$0x1]
        %v226 = vld [vmem:[%s210 + $0x38] sm:$0xf]
        %v227 = vld [vmem:[%s210 + $0x3c] sm:$0x1]
        %v228 = vld [vmem:[%s210 + $0x40] sm:$0xf]
        %v229 = vld [vmem:[%s210 + $0x44] sm:$0x1]
        %v230 = vunpack.c.l.bf16 %v212
        %v231 = vunpack.c.l.bf16 %v213
        %v232 = vunpack.c.l.bf16 %v214
        %v233 = vunpack.c.l.bf16 %v215
        %v234 = vunpack.c.l.bf16 %v216
        %v235 = vunpack.c.l.bf16 %v217
        %v236 = vunpack.c.l.bf16 %v218
        %v237 = vunpack.c.l.bf16 %v219
        %v238 = vunpack.c.l.bf16 %v220
        %v239 = vunpack.c.l.bf16 %v221
        %v240 = vunpack.c.l.bf16 %v222
        %v241 = vunpack.c.l.bf16 %v223
        %v242 = vunpack.c.l.bf16 %v224
        %v243 = vunpack.c.l.bf16 %v225
        %v244 = vunpack.c.l.bf16 %v226
        %v245 = vunpack.c.l.bf16 %v227
        %v246 = vunpack.c.l.bf16 %v228
        %v247 = vunpack.c.l.bf16 %v229
        %248 = vst [vmem:[#allocation2] sm:$0xff] %v230
        %249 = vst [vmem:[#allocation2 + $0x8] sm:$0x1] %v231
        %250 = vst [vmem:[#allocation2 + $0x10] sm:$0xff] %v232
        %251 = vst [vmem:[#allocation2 + $0x18] sm:$0x1] %v233
        %252 = vst [vmem:[#allocation2 + $0x20] sm:$0xff] %v234
        %253 = vst [vmem:[#allocation2 + $0x28] sm:$0x1] %v235
        %254 = vst [vmem:[#allocation2 + $0x30] sm:$0xff] %v236
        %255 = vst [vmem:[#allocation2 + $0x38] sm:$0x1] %v237
        %256 = vst [vmem:[#allocation2 + $0x40] sm:$0xff] %v238
        %257 = vst [vmem:[#allocation2 + $0x48] sm:$0x1] %v239
        %258 = vst [vmem:[#allocation2 + $0x50] sm:$0xff] %v240
        %259 = vst [vmem:[#allocation2 + $0x58] sm:$0x1] %v241
        %260 = vst [vmem:[#allocation2 + $0x60] sm:$0xff] %v242
        %261 = vst [vmem:[#allocation2 + $0x68] sm:$0x1] %v243
        %262 = vst [vmem:[#allocation2 + $0x70] sm:$0xff] %v244
        %263 = vst [vmem:[#allocation2 + $0x78] sm:$0x1] %v245
        %264 = vst [vmem:[#allocation2 + $0x80] sm:$0xff] %v246
        %265 = vst [vmem:[#allocation2 + $0x88] sm:$0x1] %v247
        %v266 = vld [vmem:[#allocation2] sm:$0xff]
        %v267 = vld [vmem:[#allocation2 + $0x10] sm:$0xff]
        %v268 = vld [vmem:[#allocation2 + $0x20] sm:$0xff]
        %v269 = vld [vmem:[#allocation2 + $0x30] sm:$0xff]
        %v270 = vld [vmem:[#allocation2 + $0x40] sm:$0xff]
        %v271 = vld [vmem:[#allocation2 + $0x50] sm:$0xff]
        %v272 = vld [vmem:[#allocation2 + $0x60] sm:$0xff]
        %v273 = vld [vmem:[#allocation2 + $0x70] sm:$0xff]
        %v274 = vpack.c.bf16 %v267, %v266
        %v275 = vpack.c.bf16 %v269, %v268
        %v276 = vpack.c.bf16 %v271, %v270
        %v277 = vpack.c.bf16 %v273, %v272
        %278 = vst [vmem:[#allocation3] sm:$0xff] %v274
        %279 = vst [vmem:[#allocation3 + $0x20] sm:$0xff] %v275
        %280 = vst [vmem:[#allocation3 + $0x40] sm:$0xff] %v276
        %281 = vst [vmem:[#allocation3 + $0x60] sm:$0xff] %v277
        %v282 = vld [vmem:[#allocation2 + $0x1] sm:$0xff]
        %v283 = vld [vmem:[#allocation2 + $0x11] sm:$0xff]
        %v284 = vld [vmem:[#allocation2 + $0x21] sm:$0xff]
        %v285 = vld [vmem:[#allocation2 + $0x31] sm:$0xff]
        %v286 = vld [vmem:[#allocation2 + $0x41] sm:$0xff]
        %v287 = vld [vmem:[#allocation2 + $0x51] sm:$0xff]
        %v288 = vld [vmem:[#allocation2 + $0x61] sm:$0xff]
        %v289 = vld [vmem:[#allocation2 + $0x71] sm:$0xff]
        %v290 = vpack.c.bf16 %v283, %v282
        %v291 = vpack.c.bf16 %v285, %v284
        %v292 = vpack.c.bf16 %v287, %v286
        %v293 = vpack.c.bf16 %v289, %v288
        %294 = vst [vmem:[#allocation3 + $0x8] sm:$0xff] %v290
        %295 = vst [vmem:[#allocation3 + $0x28] sm:$0xff] %v291
        %296 = vst [vmem:[#allocation3 + $0x48] sm:$0xff] %v292
        %297 = vst [vmem:[#allocation3 + $0x68] sm:$0xff] %v293
        %s298 = scalar_lea.vmem [#allocation2], 16
        %v299 = vld [vmem:[%s298] sm:$0xff]
        %v300 = vld [vmem:[%s298 + $0x10] sm:$0xff]
        %v301 = vld [vmem:[%s298 + $0x20] sm:$0xff]
        %v302 = vld [vmem:[%s298 + $0x30] sm:$0xff]
        %v303 = vld [vmem:[%s298 + $0x40] sm:$0xff]
        %v304 = vld [vmem:[%s298 + $0x50] sm:$0xff]
        %v305 = vld [vmem:[%s298 + $0x60] sm:$0xff]
        %v306 = vld [vmem:[%s298 + $0x70] sm:$0xff]
        %v307 = vpack.c.bf16 %v300, %v299
        %v308 = vpack.c.bf16 %v302, %v301
        %v309 = vpack.c.bf16 %v304, %v303
        %v310 = vpack.c.bf16 %v306, %v305
        %311 = vst [vmem:[#allocation3 + $0x10] sm:$0xff] %v307
        %312 = vst [vmem:[#allocation3 + $0x30] sm:$0xff] %v308
        %313 = vst [vmem:[#allocation3 + $0x50] sm:$0xff] %v309
        %314 = vst [vmem:[#allocation3 + $0x70] sm:$0xff] %v310
        %v315 = vld [vmem:[%s298 + $0x1] sm:$0xff]
        %v316 = vld [vmem:[%s298 + $0x11] sm:$0xff]
        %v317 = vld [vmem:[%s298 + $0x21] sm:$0xff]
        %v318 = vld [vmem:[%s298 + $0x31] sm:$0xff]
        %v319 = vld [vmem:[%s298 + $0x41] sm:$0xff]
        %v320 = vld [vmem:[%s298 + $0x51] sm:$0xff]
        %v321 = vld [vmem:[%s298 + $0x61] sm:$0xff]
        %v322 = vld [vmem:[%s298 + $0x71] sm:$0xff]
        %v323 = vpack.c.bf16 %v316, %v315
        %v324 = vpack.c.bf16 %v318, %v317
        %v325 = vpack.c.bf16 %v320, %v319
        %v326 = vpack.c.bf16 %v322, %v321
        %327 = vst [vmem:[#allocation3 + $0x18] sm:$0xff] %v323
        %328 = vst [vmem:[#allocation3 + $0x38] sm:$0xff] %v324
        %329 = vst [vmem:[#allocation3 + $0x58] sm:$0xff] %v325
        %330 = vst [vmem:[#allocation3 + $0x78] sm:$0xff] %v326
        %v331 = vld [vmem:[#allocation3] sm:$0xff]
        %v332 = vld [vmem:[#allocation3 + $0x8] sm:$0xff]
        %v333 = vld [vmem:[#allocation3 + $0x10] sm:$0xff]
        %v334 = vld [vmem:[#allocation3 + $0x18] sm:$0xff]
        %v335 = vld [vmem:[#allocation3 + $0x20] sm:$0xff]
        %v336 = vld [vmem:[#allocation3 + $0x28] sm:$0xff]
        %v337 = vld [vmem:[#allocation3 + $0x30] sm:$0xff]
        %v338 = vld [vmem:[#allocation3 + $0x38] sm:$0xff]
        %v339 = vld [vmem:[#allocation3 + $0x40] sm:$0xff]
        %v340 = vld [vmem:[#allocation3 + $0x48] sm:$0xff]
        %v341 = vld [vmem:[#allocation3 + $0x50] sm:$0xff]
        %v342 = vld [vmem:[#allocation3 + $0x58] sm:$0xff]
        %v343 = vld [vmem:[#allocation3 + $0x60] sm:$0xff]
        %v344 = vld [vmem:[#allocation3 + $0x68] sm:$0xff]
        %v345 = vld [vmem:[#allocation3 + $0x70] sm:$0xff]
        %v346 = vld [vmem:[#allocation3 + $0x78] sm:$0xff]
        %v347 = vld [vmem:[#allocation4] sm:$0xf]
        %v348 = vld [vmem:[#allocation4 + $0x4] sm:$0xf]
        %v349 = vld [vmem:[#allocation4 + $0x8] sm:$0xf]
        %v350 = vld [vmem:[#allocation4 + $0xc] sm:$0xf]
        %v351 = vld [vmem:[#allocation4 + $0x10] sm:$0xf]
        %v352 = vld [vmem:[#allocation4 + $0x14] sm:$0xf]
        %v353 = vld [vmem:[#allocation4 + $0x18] sm:$0xf]
        %v354 = vld [vmem:[#allocation4 + $0x1c] sm:$0xf]
        %v355 = vld [vmem:[#allocation4 + $0x20] sm:$0xf]
        %v356 = vld [vmem:[#allocation4 + $0x24] sm:$0xf]
        %v357 = vld [vmem:[#allocation4 + $0x28] sm:$0xf]
        %v358 = vld [vmem:[#allocation4 + $0x2c] sm:$0xf]
        %v359 = vld [vmem:[#allocation4 + $0x30] sm:$0xf]
        %v360 = vld [vmem:[#allocation4 + $0x34] sm:$0xf]
        %v361 = vld [vmem:[#allocation4 + $0x38] sm:$0xf]
        %v362 = vld [vmem:[#allocation4 + $0x3c] sm:$0xf]
        %v363 = vld [vmem:[#allocation4 + $0x40] sm:$0xf]
        %v364 = vld [vmem:[#allocation4 + $0x44] sm:$0xf]
        %v365 = vld [vmem:[#allocation4 + $0x48] sm:$0xf]
        %v366 = vld [vmem:[#allocation4 + $0x4c] sm:$0xf]
        %v367 = vld [vmem:[#allocation4 + $0x50] sm:$0xf]
        %v368 = vld [vmem:[#allocation4 + $0x54] sm:$0xf]
        %v369 = vld [vmem:[#allocation4 + $0x58] sm:$0xf]
        %v370 = vld [vmem:[#allocation4 + $0x5c] sm:$0xf]
        %v371 = vld [vmem:[#allocation4 + $0x60] sm:$0xf]
        %v372 = vld [vmem:[#allocation4 + $0x64] sm:$0xf]
        %v373 = vld [vmem:[#allocation4 + $0x68] sm:$0xf]
        %v374 = vld [vmem:[#allocation4 + $0x6c] sm:$0xf]
        %v375 = vld [vmem:[#allocation4 + $0x70] sm:$0xf]
        %v376 = vld [vmem:[#allocation4 + $0x74] sm:$0xf]
        %v377 = vld [vmem:[#allocation4 + $0x78] sm:$0xf]
        %v378 = vld [vmem:[#allocation4 + $0x7c] sm:$0xf]
        %v379 = vld [vmem:[#allocation4 + $0x80] sm:$0xf]
        %v380 = vld [vmem:[#allocation4 + $0x84] sm:$0xf]
        %v381 = vld [vmem:[#allocation4 + $0x88] sm:$0xf]
        %v382 = vld [vmem:[#allocation4 + $0x8c] sm:$0xf]
        %v383 = vld [vmem:[#allocation4 + $0x90] sm:$0xf]
        %v384 = vld [vmem:[#allocation4 + $0x94] sm:$0xf]
        %v385 = vld [vmem:[#allocation4 + $0x98] sm:$0xf]
        %v386 = vld [vmem:[#allocation4 + $0x9c] sm:$0xf]
        %v387 = vld [vmem:[#allocation4 + $0xa0] sm:$0xf]
        %v388 = vld [vmem:[#allocation4 + $0xa4] sm:$0xf]
        %v389 = vld [vmem:[#allocation4 + $0xa8] sm:$0xf]
        %v390 = vld [vmem:[#allocation4 + $0xac] sm:$0xf]
        %v391 = vld [vmem:[#allocation4 + $0xb0] sm:$0xf]
        %v392 = vld [vmem:[#allocation4 + $0xb4] sm:$0xf]
        %v393 = vld [vmem:[#allocation4 + $0xb8] sm:$0xf]
        %v394 = vld [vmem:[#allocation4 + $0xbc] sm:$0xf]
        %v395 = vld [vmem:[#allocation4 + $0xc0] sm:$0xf]
        %v396 = vld [vmem:[#allocation4 + $0xc4] sm:$0xf]
        %v397 = vld [vmem:[#allocation4 + $0xc8] sm:$0xf]
        %v398 = vld [vmem:[#allocation4 + $0xcc] sm:$0xf]
        %v399 = vld [vmem:[#allocation4 + $0xd0] sm:$0xf]
        %v400 = vld [vmem:[#allocation4 + $0xd4] sm:$0xf]
        %v401 = vld [vmem:[#allocation4 + $0xd8] sm:$0xf]
        %v402 = vld [vmem:[#allocation4 + $0xdc] sm:$0xf]
        %v403 = vld [vmem:[#allocation4 + $0xe0] sm:$0xf]
        %v404 = vld [vmem:[#allocation4 + $0xe4] sm:$0xf]
        %v405 = vld [vmem:[#allocation4 + $0xe8] sm:$0xf]
        %v406 = vld [vmem:[#allocation4 + $0xec] sm:$0xf]
        %v407 = vld [vmem:[#allocation4 + $0xf0] sm:$0xf]
        %v408 = vld [vmem:[#allocation4 + $0xf4] sm:$0xf]
        %v409 = vld [vmem:[#allocation4 + $0xf8] sm:$0xf]
        %v410 = vld [vmem:[#allocation4 + $0xfc] sm:$0xf]
        %v475 = vunpack.c.l.b16 %v347
        %v476 = vunpack.c.l.b16 %v348
        %v477 = vunpack.c.l.b16 %v349
        %v478 = vunpack.c.l.b16 %v350
        %v479 = vunpack.c.l.b16 %v351
        %v480 = vunpack.c.l.b16 %v352
        %v481 = vunpack.c.l.b16 %v353
        %v482 = vunpack.c.l.b16 %v354
        %v483 = vunpack.c.l.b16 %v355
        %v484 = vunpack.c.l.b16 %v356
        %v485 = vunpack.c.l.b16 %v357
        %v486 = vunpack.c.l.b16 %v358
        %v487 = vunpack.c.l.b16 %v359
        %v488 = vunpack.c.l.b16 %v360
        %v489 = vunpack.c.l.b16 %v361
        %v490 = vunpack.c.l.b16 %v362
        %v491 = vunpack.c.l.b16 %v363
        %v492 = vunpack.c.l.b16 %v364
        %v493 = vunpack.c.l.b16 %v365
        %v494 = vunpack.c.l.b16 %v366
        %v495 = vunpack.c.l.b16 %v367
        %v496 = vunpack.c.l.b16 %v368
        %v497 = vunpack.c.l.b16 %v369
        %v498 = vunpack.c.l.b16 %v370
        %v499 = vunpack.c.l.b16 %v371
        %v500 = vunpack.c.l.b16 %v372
        %v501 = vunpack.c.l.b16 %v373
        %v502 = vunpack.c.l.b16 %v374
        %v503 = vunpack.c.l.b16 %v375
        %v504 = vunpack.c.l.b16 %v376
        %v505 = vunpack.c.l.b16 %v377
        %v506 = vunpack.c.l.b16 %v378
        %v507 = vunpack.c.l.b16 %v379
        %v508 = vunpack.c.l.b16 %v380
        %v509 = vunpack.c.l.b16 %v381
        %v510 = vunpack.c.l.b16 %v382
        %v511 = vunpack.c.l.b16 %v383
        %v512 = vunpack.c.l.b16 %v384
        %v513 = vunpack.c.l.b16 %v385
        %v514 = vunpack.c.l.b16 %v386
        %v515 = vunpack.c.l.b16 %v387
        %v516 = vunpack.c.l.b16 %v388
        %v517 = vunpack.c.l.b16 %v389
        %v518 = vunpack.c.l.b16 %v390
        %v519 = vunpack.c.l.b16 %v391
        %v520 = vunpack.c.l.b16 %v392
        %v521 = vunpack.c.l.b16 %v393
        %v522 = vunpack.c.l.b16 %v394
        %v523 = vunpack.c.l.b16 %v395
        %v524 = vunpack.c.l.b16 %v396
        %v525 = vunpack.c.l.b16 %v397
        %v526 = vunpack.c.l.b16 %v398
        %v527 = vunpack.c.l.b16 %v399
        %v528 = vunpack.c.l.b16 %v400
        %v529 = vunpack.c.l.b16 %v401
        %v530 = vunpack.c.l.b16 %v402
        %v531 = vunpack.c.l.b16 %v403
        %v532 = vunpack.c.l.b16 %v404
        %v533 = vunpack.c.l.b16 %v405
        %v534 = vunpack.c.l.b16 %v406
        %v535 = vunpack.c.l.b16 %v407
        %v536 = vunpack.c.l.b16 %v408
        %v537 = vunpack.c.l.b16 %v409
        %v538 = vunpack.c.l.b16 %v410
        %v539 = vpack.c.b16 %v476, %v475
        %v540 = vpack.c.b16 %v478, %v477
        %v541 = vpack.c.b16 %v480, %v479
        %v542 = vpack.c.b16 %v482, %v481
        %v543 = vpack.c.b16 %v484, %v483
        %v544 = vpack.c.b16 %v486, %v485
        %v545 = vpack.c.b16 %v488, %v487
        %v546 = vpack.c.b16 %v490, %v489
        %v547 = vpack.c.b16 %v492, %v491
        %v548 = vpack.c.b16 %v494, %v493
        %v549 = vpack.c.b16 %v496, %v495
        %v550 = vpack.c.b16 %v498, %v497
        %v551 = vpack.c.b16 %v500, %v499
        %v552 = vpack.c.b16 %v502, %v501
        %v553 = vpack.c.b16 %v504, %v503
        %v554 = vpack.c.b16 %v506, %v505
        %v555 = vpack.c.b16 %v508, %v507
        %v556 = vpack.c.b16 %v510, %v509
        %v557 = vpack.c.b16 %v512, %v511
        %v558 = vpack.c.b16 %v514, %v513
        %v559 = vpack.c.b16 %v516, %v515
        %v560 = vpack.c.b16 %v518, %v517
        %v561 = vpack.c.b16 %v520, %v519
        %v562 = vpack.c.b16 %v522, %v521
        %v563 = vpack.c.b16 %v524, %v523
        %v564 = vpack.c.b16 %v526, %v525
        %v565 = vpack.c.b16 %v528, %v527
        %v566 = vpack.c.b16 %v530, %v529
        %v567 = vpack.c.b16 %v532, %v531
        %v568 = vpack.c.b16 %v534, %v533
        %v569 = vpack.c.b16 %v536, %v535
        %v570 = vpack.c.b16 %v538, %v537
        %603 = vmatprep.subr.bf16.mxu0 0
        %604 = vmatpush1.bf16.msra.mxu0 %v539
        %605 = vmatprep.subr.bf16.mxu0 0
        %606 = vmatpush1.bf16.msra.mxu0 %v540
        %607 = vmatprep.subr.bf16.mxu0 0
        %608 = vmatpush1.bf16.msra.mxu0 %v541
        %609 = vmatprep.subr.bf16.mxu0 0
        %610 = vmatpush1.bf16.msra.mxu0 %v542
        %611 = vmatprep.subr.bf16.mxu0 0
        %612 = vmatpush1.bf16.msra.mxu0 %v543
        %613 = vmatprep.subr.bf16.mxu0 0
        %614 = vmatpush1.bf16.msra.mxu0 %v544
        %615 = vmatprep.subr.bf16.mxu0 0
        %616 = vmatpush1.bf16.msra.mxu0 %v545
        %617 = vmatprep.subr.bf16.mxu0 0
        %618 = vmatpush1.bf16.msra.mxu0 %v546
        %619 = vmatprep.subr.bf16.mxu0 0
        %620 = vmatpush1.bf16.msra.mxu0 %v547
        %621 = vmatprep.subr.bf16.mxu0 0
        %622 = vmatpush1.bf16.msra.mxu0 %v548
        %623 = vmatprep.subr.bf16.mxu0 0
        %624 = vmatpush1.bf16.msra.mxu0 %v549
        %625 = vmatprep.subr.bf16.mxu0 0
        %626 = vmatpush1.bf16.msra.mxu0 %v550
        %627 = vmatprep.subr.bf16.mxu0 0
        %628 = vmatpush1.bf16.msra.mxu0 %v551
        %629 = vmatprep.subr.bf16.mxu0 0
        %630 = vmatpush1.bf16.msra.mxu0 %v552
        %631 = vmatprep.subr.bf16.mxu0 0
        %632 = vmatpush1.bf16.msra.mxu0 %v553
        %633 = vmatprep.subr.bf16.mxu0 0
        %634 = vmatpush1.bf16.msra.mxu0 %v554
        %635 = vmatprep.mubr.bf16.mxu0 %v332
        %636 = vmatmul.mubr.bf16.gmra.mrb[0].mxu0 %v331
        %v637 = vpop.f32.mrb[0].mxu0
        %v638 = vadd.f32 0.0, %v637
        %v639 = vpop.f32.mrb[0].mxu0
        %v640 = vpop.f32.mrb[0].mxu0
        %v641 = vadd.f32 0.0, %v640
        %v642 = vpop.f32.mrb[0].mxu0
        %643 = vmatprep.mubr.bf16.mxu0 %v336
        %644 = vmatmul.mubr.bf16.gmra.mrb[0].mxu0 %v335
        %v645 = vpop.f32.mrb[0].mxu0
        %v646 = vadd.f32 0.0, %v645
        %v647 = vpop.f32.mrb[0].mxu0
        %v648 = vpop.f32.mrb[0].mxu0
        %v649 = vadd.f32 0.0, %v648
        %v650 = vpop.f32.mrb[0].mxu0
        %651 = vmatprep.mubr.bf16.mxu0 %v340
        %652 = vmatmul.mubr.bf16.gmra.mrb[0].mxu0 %v339
        %v653 = vpop.f32.mrb[0].mxu0
        %v654 = vadd.f32 0.0, %v653
        %v655 = vpop.f32.mrb[0].mxu0
        %v656 = vpop.f32.mrb[0].mxu0
        %v657 = vadd.f32 0.0, %v656
        %v658 = vpop.f32.mrb[0].mxu0
        %659 = vmatprep.mubr.bf16.mxu0 %v344
        %660 = vmatmul.mubr.bf16.gmra.mrb[0].mxu0 %v343
        %v661 = vpop.f32.mrb[0].mxu0
        %v662 = vadd.f32 0.0, %v661
        %v663 = vpop.f32.mrb[0].mxu0
        %v664 = vpop.f32.mrb[0].mxu0
        %v665 = vadd.f32 0.0, %v664
        %v666 = vpop.f32.mrb[0].mxu0
        %667 = vdwg.mxu0
        %668 = vmatprep.subr.bf16.mxu0 0
        %669 = vmatpush1.bf16.msra.mxu0 %v555
        %670 = vmatprep.subr.bf16.mxu0 0
        %671 = vmatpush1.bf16.msra.mxu0 %v556
        %672 = vmatprep.subr.bf16.mxu0 0
        %673 = vmatpush1.bf16.msra.mxu0 %v557
        %674 = vmatprep.subr.bf16.mxu0 0
        %675 = vmatpush1.bf16.msra.mxu0 %v558
        %676 = vmatprep.subr.bf16.mxu0 0
        %677 = vmatpush1.bf16.msra.mxu0 %v559
        %678 = vmatprep.subr.bf16.mxu0 0
        %679 = vmatpush1.bf16.msra.mxu0 %v560
        %680 = vmatprep.subr.bf16.mxu0 0
        %681 = vmatpush1.bf16.msra.mxu0 %v561
        %682 = vmatprep.subr.bf16.mxu0 0
        %683 = vmatpush1.bf16.msra.mxu0 %v562
        %684 = vmatprep.subr.bf16.mxu0 0
        %685 = vmatpush1.bf16.msra.mxu0 %v563
        %686 = vmatprep.subr.bf16.mxu0 0
        %687 = vmatpush1.bf16.msra.mxu0 %v564
        %688 = vmatprep.subr.bf16.mxu0 0
        %689 = vmatpush1.bf16.msra.mxu0 %v565
        %690 = vmatprep.subr.bf16.mxu0 0
        %691 = vmatpush1.bf16.msra.mxu0 %v566
        %692 = vmatprep.subr.bf16.mxu0 0
        %693 = vmatpush1.bf16.msra.mxu0 %v567
        %694 = vmatprep.subr.bf16.mxu0 0
        %695 = vmatpush1.bf16.msra.mxu0 %v568
        %696 = vmatprep.subr.bf16.mxu0 0
        %697 = vmatpush1.bf16.msra.mxu0 %v569
        %698 = vmatprep.subr.bf16.mxu0 0
        %699 = vmatpush1.bf16.msra.mxu0 %v570
        %700 = vmatprep.mubr.bf16.mxu0 %v334
        %701 = vmatmul.mubr.bf16.gmra.mrb[0].mxu0 %v333
        %v702 = vpop.f32.mrb[0].mxu0
        %v703 = vadd.f32 %v638, %v702
        %v704 = vpop.f32.mrb[0].mxu0
        %v705 = vpop.f32.mrb[0].mxu0
        %v706 = vadd.f32 %v641, %v705
        %v707 = vpop.f32.mrb[0].mxu0
        %708 = vmatprep.mubr.bf16.mxu0 %v338
        %709 = vmatmul.mubr.bf16.gmra.mrb[0].mxu0 %v337
        %v710 = vpop.f32.mrb[0].mxu0
        %v711 = vadd.f32 %v646, %v710
        %v712 = vpop.f32.mrb[0].mxu0
        %v713 = vpop.f32.mrb[0].mxu0
        %v714 = vadd.f32 %v649, %v713
        %v715 = vpop.f32.mrb[0].mxu0
        %716 = vmatprep.mubr.bf16.mxu0 %v342
        %717 = vmatmul.mubr.bf16.gmra.mrb[0].mxu0 %v341
        %v718 = vpop.f32.mrb[0].mxu0
        %v719 = vadd.f32 %v654, %v718
        %v720 = vpop.f32.mrb[0].mxu0
        %v721 = vpop.f32.mrb[0].mxu0
        %v722 = vadd.f32 %v657, %v721
        %v723 = vpop.f32.mrb[0].mxu0
        %724 = vmatprep.mubr.bf16.mxu0 %v346
        %725 = vmatmul.mubr.bf16.gmra.mrb[0].mxu0 %v345
        %v726 = vpop.f32.mrb[0].mxu0
        %v727 = vadd.f32 %v662, %v726
        %v728 = vpop.f32.mrb[0].mxu0
        %v729 = vpop.f32.mrb[0].mxu0
        %v730 = vadd.f32 %v665, %v729
        %v731 = vpop.f32.mrb[0].mxu0
        %732 = vdwg.mxu0
        %v733 = vld [vmem:[%s2] sm:$0x1]
        %v735 = vlaneseq
        %v736 = vshrl.u32 %v735, 7
        %v737 = vsub.s32 0, %v736
        %v738 = vrot.slane %v733, %v737
        %v740 = vmul.f32 %v703, %v738
        %v741 = vmul.f32 %v706, %v738
        %v742 = vmul.f32 %v711, %v738
        %v743 = vmul.f32 %v714, %v738
        %v744 = vmul.f32 %v719, %v738
        %v745 = vmul.f32 %v722, %v738
        %v746 = vmul.f32 %v727, %v738
        %v747 = vmul.f32 %v730, %v738
        %v748 = vld [vmem:[%s3] sm:$0x1]
        %v750 = vlaneseq
        %v751 = vshrl.u32 %v750, 7
        %v752 = vsub.s32 0, %v751
        %v753 = vrot.slane %v748, %v752
        %v755 = vadd.f32 %v740, %v753
        %v756 = vadd.f32 %v741, %v753
        %v757 = vadd.f32 %v742, %v753
        %v758 = vadd.f32 %v743, %v753
        %v759 = vadd.f32 %v744, %v753
        %v760 = vadd.f32 %v745, %v753
        %v761 = vadd.f32 %v746, %v753
        %v762 = vadd.f32 %v747, %v753
        %v763 = vmax.f32 %v755, 0.0
        %v764 = vmax.f32 %v756, 0.0
        %v765 = vmax.f32 %v757, 0.0
        %v766 = vmax.f32 %v758, 0.0
        %v767 = vmax.f32 %v759, 0.0
        %v768 = vmax.f32 %v760, 0.0
        %v769 = vmax.f32 %v761, 0.0
        %v770 = vmax.f32 %v762, 0.0
        %v771 = vpack.c.bf16 %v764, %v763
        %v772 = vpack.c.bf16 %v766, %v765
        %v773 = vpack.c.bf16 %v768, %v767
        %v774 = vpack.c.bf16 %v770, %v769
        %v779 = vunpack.c.l.b16 %v771
        %v780 = vunpack.c.h.b16 %v771
        %v781 = vunpack.c.l.b16 %v772
        %v782 = vunpack.c.h.b16 %v772
        %v783 = vunpack.c.l.b16 %v773
        %v784 = vunpack.c.h.b16 %v773
        %v785 = vunpack.c.l.b16 %v774
        %v786 = vunpack.c.h.b16 %v774
        %v787 = vpack.c.b16 %v779, %v779
        %v788 = vpack.c.b16 %v780, %v780
        %v789 = vpack.c.b16 %v781, %v781
        %v790 = vpack.c.b16 %v782, %v782
        %v791 = vpack.c.b16 %v783, %v783
        %v792 = vpack.c.b16 %v784, %v784
        %v793 = vpack.c.b16 %v785, %v785
        %v794 = vpack.c.b16 %v786, %v786
        %803 = vst [vmem:[%s205] sm:$0xf] %v787
        %804 = vst [vmem:[%s205 + $0x4] sm:$0xf] %v788
        %805 = vst [vmem:[%s205 + $0x8] sm:$0xf] %v789
        %806 = vst [vmem:[%s205 + $0xc] sm:$0xf] %v790
        %807 = vst [vmem:[%s205 + $0x10] sm:$0xf] %v791
        %808 = vst [vmem:[%s205 + $0x14] sm:$0xf] %v792
        %809 = vst [vmem:[%s205 + $0x18] sm:$0xf] %v793
        %810 = vst [vmem:[%s205 + $0x1c] sm:$0xf] %v794
        %s811 = sand.u32 %s116, 1
        %s812 = scalar_lea.sflag [#allocation6], %s811
        %s813 = sand.u32 %s116, 1
        %s814 = smul.addr %s813, 32
        %s815 = scalar_lea.vmem [#allocation7], %s814
        // Predicated region
        $region41: #{tpu_custom_call.1} parent=35 // pred_check
          %p816 = pneg %p126
        $region42: #{tpu_custom_call.1} parent=35 // pred_check_branch
          %818 = sbr.rel (%p816) target = $region44
        $region43: #{tpu_custom_call.1} parent=35 // pred_region
          %s820 = ssub.s32 512, 512
          %821 = vsyncadd %s812, %s820
          %s822 = smul.addr %s19, 8
          %s823 = smul.addr %s822, 64
          %s824 = scalar_lea.hbm %s4, %s823
          %s825 = sshll.u32 %s815, 4
          %s826 = int_to_ptr.vmem [resolvable:$true] %s825
          %831 = dma.vmem_to_hbm [thread:$0]  %s826, 512, %s824, %s812, 64, 64, 4
        $region44: #{tpu_custom_call.1} parent=35 // pred_fallthru
          _
      $region36: #{tpu_custom_call.1} parent=5 // pred_fallthru
        _
      %p832 = scmp.le.s32.totalorder 2, %s14
      // Predicated region
      $region45: #{tpu_custom_call.1} parent=5 // pred_check
        %p833 = pneg %p832
      $region46: #{tpu_custom_call.1} parent=5 // pred_check_branch
        %835 = sbr.rel (%p833) target = $region48
      $region47: #{tpu_custom_call.1} parent=5 // pred_region
        %s836 = ssub.s32 %s14, 2
        // Predicated region
        $region49: #{tpu_custom_call.1} parent=47 // pred_check
          %p837 = pneg %p132
        $region50: #{tpu_custom_call.1} parent=47 // pred_check_branch
          %839 = sbr.rel (%p837) target = $region52
        $region51: #{tpu_custom_call.1} parent=47 // pred_region
          %s840 = sand.u32 %s117, 1
          %s841 = scalar_lea.sflag [#allocation6], %s840
          %s842 = sand.u32 %s117, 1
          %s843 = smul.addr %s842, 32
          %s844 = scalar_lea.vmem [#allocation7], %s843
          %845 = dma.done %s841, 512
        $region52: #{tpu_custom_call.1} parent=47 // pred_fallthru
          _
      $region48: #{tpu_custom_call.1} parent=5 // pred_fallthru
        _
    $region6: #{tpu_custom_call.1} parent=1 // loop_footer
      %s18 = sadd.s32 1, %s14
    $region7: #{tpu_custom_call.1} parent=1 // loop_footer_branch
      %13 = sbr.rel target = $region3
    $region8: #{tpu_custom_call.1} parent=1 // loop_exit
      _
    %846 = vsyncpa [#allocation5], 1
    %s847 = scalar_lea.sflag [#allocation5], 1
    %848 = vsyncpa %s847, 1
    %849 = vsyncpa [#allocation6], 1
    %s850 = scalar_lea.sflag [#allocation6], 1
    %851 = vsyncpa %s850, 1

</llo_original>
